<compile_context>
chip_gen: v7x
topology: tpu7x:2x2x1
jax: 0.10.0
libtpu: 0.0.40
codegen_flags: <defaults>
</compile_context>

<pallas_src>
from functools import partial
from typing import NamedTuple

import numpy as np
import jax
import jax.numpy as jnp
from jax.experimental import pallas as pl
from jax.experimental.pallas import tpu as pltpu


def _round_up(x, m):
    return ((x + m - 1) // m) * m


class PreparedGraph(NamedTuple):
    adj: jax.Array          # (nd, ns) int8 padded adjacency, adj[i, j] = edge j -> i
    block_ids: jax.Array    # (ndt * max_blocks,) int32 flat nonzero-src-block ids
    block_counts: jax.Array # (ndt,) int32 number of nonzero src blocks per dst tile
    n_nodes: int
    tm: int
    tk: int
    max_blocks: int
    nnz_blocks: int


def prepare_graph(adj, *, tile_m=512, tile_k=1024):
    """One-time, graph-build-time adjacency packing (int8, padded, block-sparse
    metadata). Kept out of the per-forward hot path so the O(N^2) cast/pad is
    not re-paid on every call."""
    adj_np = np.asarray(adj)
    N = adj_np.shape[0]
    # dst granularity 32 keeps int8 sublane packing happy even for tiny graphs.
    tm = min(tile_m, _round_up(N, 32))
    tk = min(tile_k, _round_up(N, 128))
    nd = _round_up(N, tm)
    ns = _round_up(N, tk)

    adj_p = np.zeros((nd, ns), np.int8)
    adj_p[:N, :N] = (adj_np != 0)

    ndt, nst = nd // tm, ns // tk
    nz = adj_p.reshape(ndt, tm, nst, tk).any(axis=(1, 3))       # (ndt, nst) bool
    counts = nz.sum(axis=1).astype(np.int32)                    # (ndt,)
    max_b = max(int(counts.max()) if counts.size else 0, 1)

    ids = np.zeros((ndt, max_b), np.int32)
    for r in range(ndt):
        idx = np.nonzero(nz[r])[0]
        if idx.size:
            ids[r, :idx.size] = idx
            ids[r, idx.size:] = idx[-1]   # repeat last valid block -> DMA skipped
    nnz_blocks = int(counts.sum())

    return PreparedGraph(
        adj=jnp.asarray(adj_p),
        block_ids=jnp.asarray(ids.reshape(-1)),   # flat 1D: avoids SMEM 2D padding
        block_counts=jnp.asarray(counts),
        n_nodes=N, tm=tm, tk=tk, max_blocks=max_b, nnz_blocks=nnz_blocks,
    )


def fa_layer_kernel(ids_ref, counts_ref,                 # scalar prefetch (SMEM)
                    s_dst_ref, s_src_ref, d_dst_ref, adj_ref, hs_ref,
                    z_ref, *, gate_dtype):
    # s_dst_ref : (TM, 1)   gate score, dst half (precomputed)
    # s_src_ref : (1, TK)   gate score + bias, src half (lane-major, remapped block)
    # d_dst_ref : (TM, 1)   destination-node degree scalars
    # adj_ref   : (TM, TK)  int8 0/1 adjacency block (remapped nonzero block)
    # hs_ref    : (TK, Dp)  bf16 source features pre-scaled by d_src (remapped block)
    # z_ref     : (TM, Dp)  f32 output tile == accumulator (revisited across k)
    i = pl.program_id(0)
    k = pl.program_id(1)

    @pl.when(k == 0)
    def _():
        z_ref[...] = jnp.zeros_like(z_ref)

    @pl.when(k < counts_ref[i])          # skip padded (all-zero) src blocks
    def _():
        # Pairwise gate scores: broadcast add + tanh (EUP). f32 by default
        # (v5e-safe); bf16 on v6e/v7x via gate_dtype.
        s = (s_dst_ref[...].astype(gate_dtype)
             + s_src_ref[...].astype(gate_dtype))                 # (TM, TK)
        g = jnp.tanh(s)
        # Mask to actual edges (int8 0/1 upcast), bf16 operand for the MXU.
        e = (g * adj_ref[...].astype(gate_dtype)).astype(jnp.bfloat16)
        # Aggregate against degree-prescaled bf16 source features; f32 acc.
        z_ref[...] += jnp.dot(e, hs_ref[...],
                              preferred_element_type=jnp.float32)

    @pl.when(k == pl.num_programs(1) - 1)
    def _():
        # Destination-side degree scaling applied once, in place.
        z_ref[...] = d_dst_ref[...] * z_ref[...]


def fa_layer_forward(h, d, graph: PreparedGraph, gate_w, gate_b, *,
                     gate_dtype=jnp.float32):
    """h: (N, D) f32, d: (N,) f32, graph: PreparedGraph(adj[i,j]=1 for edge j->i),
    gate_w: (1, 2D) [first half dst, second half src], gate_b: (1,).
    Returns z: (N, D) f32."""
    N, D = h.shape
    assert N == graph.n_nodes
    tm, tk, max_b = graph.tm, graph.tk, graph.max_blocks
    nd, ns = graph.adj.shape
    ndt = nd // tm
    dp = _round_up(D, 128)               # lane-dense output

    h = h.astype(jnp.float32)
    d = d.astype(jnp.float32)
    gate_w = gate_w.astype(jnp.float32)
    gate_b = gate_b.astype(jnp.float32)

    # ---- grid-invariant precompute (hoisted out of the kernel) -------------
    # gate([h_dst ; h_src]) = h_dst @ w_dst + h_src @ w_src + b
    s_dst = (h @ gate_w[0, :D]).reshape(N, 1)                    # (N, 1)
    s_src = (h @ gate_w[0, D:] + gate_b[0]).reshape(1, N)        # (1, N)
    # Degree product factored out: z_i = d_i * sum_j g_ij * adj_ij * (d_j h_j)
    h_src = (h * d[:, None]).astype(jnp.bfloat16)                # bf16 MXU RHS
    d_dst = d.reshape(N, 1)

    # Small O(N) / O(N*D) padding (cheap compared to the O(N^2) adjacency).
    s_dst_p = jnp.zeros((nd, 1), jnp.float32).at[:N].set(s_dst)
    d_dst_p = jnp.zeros((nd, 1), jnp.float32).at[:N].set(d_dst)
    s_src_p = jnp.zeros((1, ns), jnp.float32).at[:, :N].set(s_src)
    hs_p = jnp.zeros((ns, dp), jnp.bfloat16).at[:N, :D].set(h_src)

    grid = (ndt, max_b)

    # VMEM budget: double-buffered int8 adj + bf16 hs + f32 out tiles plus the
    # (tm, tk) elementwise intermediates; capped under v7x's 64 MiB physical.
    vmem_est = (2 * tm * tk * 1 + 2 * tk * dp * 2 + 2 * tm * dp * 4
                + 4 * tm * tk * 4 + (1 << 16))
    vmem_limit = int(min(max(2 * vmem_est, 32 << 20), 60 << 20))

    cost = pl.CostEstimate(
        flops=2 * graph.nnz_blocks * tm * tk * dp,
        transcendentals=graph.nnz_blocks * tm * tk,
        bytes_accessed=(graph.nnz_blocks * tm * tk * 1      # int8 adjacency
                        + graph.nnz_blocks * tk * dp * 2    # bf16 hs re-stream
                        + nd * dp * 4                       # output
                        + ns * 4 + nd * 8))

    def _blk(i, k, ids, cnt):            # compressed src-block index for step k
        return ids[i * max_b + k]

    z_p = pl.pallas_call(
        partial(fa_layer_kernel, gate_dtype=gate_dtype),
        out_shape=jax.ShapeDtypeStruct((nd, dp), jnp.float32),
        grid_spec=pltpu.PrefetchScalarGridSpec(
            num_scalar_prefetch=2,
            grid=grid,
            in_specs=[
                pl.BlockSpec((tm, 1), lambda i, k, ids, cnt: (i, 0)),          # s_dst
                pl.BlockSpec((1, tk), lambda i, k, ids, cnt: (0, _blk(i, k, ids, cnt))),  # s_src
                pl.BlockSpec((tm, 1), lambda i, k, ids, cnt: (i, 0)),          # d_dst
                pl.BlockSpec((tm, tk), lambda i, k, ids, cnt: (i, _blk(i, k, ids, cnt))),  # adj (int8)
                pl.BlockSpec((tk, dp), lambda i, k, ids, cnt: (_blk(i, k, ids, cnt), 0)),  # hs (bf16)
            ],
            out_specs=pl.BlockSpec((tm, dp), lambda i, k, ids, cnt: (i, 0)),
        ),
        compiler_params=pltpu.CompilerParams(
            # dst tiles independent -> megacore split; src axis is the reduction.
            dimension_semantics=("parallel", "arbitrary"),
            vmem_limit_bytes=vmem_limit),
        cost_estimate=cost,
    )(graph.block_ids, graph.block_counts, s_dst_p, s_src_p, d_dst_p,
      graph.adj, hs_p)

    return z_p[:N, :D]


def fa_layer_reference(h, d, adj, gate_w, gate_b):
    N, D = h.shape
    s_dst = h @ gate_w[:, :D].T   # (N, 1)
    s_src = h @ gate_w[:, D:].T   # (N, 1)
    g = jnp.tanh(s_dst + s_src.T + gate_b[0])          # (N, N): g[i, j]
    e = g * d[:, None] * d[None, :] * adj
    return e @ h


if __name__ == "__main__":
    key = jax.random.PRNGKey(0)
    k_h, k_w, k_b, k_adj = jax.random.split(key, 4)

    N = 16          # number of graph nodes
    D = 32          # in_dim (hidden feature size)

    # Node features.
    h = jax.random.normal(k_h, (N, D), dtype=jnp.float32)

    # Synthetic directed adjacency (0/1), adj[i, j] = edge from src j to dst i.
    adj = (jax.random.uniform(k_adj, (N, N)) < 0.3).astype(jnp.float32)
    adj = adj * (1.0 - jnp.eye(N, dtype=jnp.float32))    # drop self loops

    # Node scalar d (FAGCN uses deg^{-1/2}); derive from in-degree here.
    deg = jnp.maximum(adj.sum(axis=1), 1.0)
    d = 1.0 / jnp.sqrt(deg)

    # gate = nn.Linear(2*D, 1) with xavier_normal_(gain=1.414) weight init.
    fan_in, fan_out = 2 * D, 1
    std = 1.414 * (2.0 / (fan_in + fan_out)) ** 0.5
    gate_w = std * jax.random.normal(k_w, (1, 2 * D), dtype=jnp.float32)
    bound = 1.0 / (fan_in ** 0.5)
    gate_b = jax.random.uniform(k_b, (1,), minval=-bound, maxval=bound,
                                dtype=jnp.float32)

    # One-time graph packing, then the kernel call.
    graph = prepare_graph(adj, tile_m=512, tile_k=1024)
    z = fa_layer_forward(h, d, graph, gate_w, gate_b)
    z = jax.block_until_ready(z)

    z_ref = fa_layer_reference(h, d, adj, gate_w, gate_b)
    assert z.shape == (N, D)
    # bf16 MXU operands -> ~1e-3-level error vs the pure-f32 reference.
    assert jnp.allclose(z, z_ref, atol=3e-2, rtol=3e-2)

    # Second, multi-tile banded graph exercising the block-sparse path
    # (varying per-dst-tile block counts + padded slots).
    N2 = 272
    k2h, k2a = jax.random.split(jax.random.PRNGKey(1))
    h2 = jax.random.normal(k2h, (N2, D), dtype=jnp.float32)
    row = jnp.arange(N2)
    band = jnp.abs(row[:, None] - row[None, :]) <= 24
    rand = jax.random.uniform(k2a, (N2, N2)) < 0.3
    adj2 = (band & rand).astype(jnp.float32) * (1.0 - jnp.eye(N2))
    deg2 = jnp.maximum(adj2.sum(axis=1), 1.0)
    d2 = 1.0 / jnp.sqrt(deg2)

    graph2 = prepare_graph(adj2, tile_m=64, tile_k=128)
    z2 = fa_layer_forward(h2, d2, graph2, gate_w, gate_b)
    z2 = jax.block_until_ready(z2)
    z2_ref = fa_layer_reference(h2, d2, adj2, gate_w, gate_b)
    assert z2.shape == (N2, D)
    assert jnp.allclose(z2, z2_ref, atol=3e-2, rtol=3e-2)

    print("KERNEL_OK")
</pallas_src>

<mosaic_0001>
module attributes {stable_mosaic.version = 11 : i64} {
  func.func @fa_layer_kernel(%arg0: i32, %arg1: i32, %arg2: memref<1xi32, #tpu.memory_space<smem>>, %arg3: memref<1xi32, #tpu.memory_space<smem>>, %arg4: memref<32x1xf32, #tpu.memory_space<vmem>>, %arg5: memref<1x128xf32, #tpu.memory_space<vmem>>, %arg6: memref<32x1xf32, #tpu.memory_space<vmem>>, %arg7: memref<32x128xi8, #tpu.memory_space<vmem>>, %arg8: memref<128x128xbf16, #tpu.memory_space<vmem>>, %arg9: memref<32x128xf32, #tpu.memory_space<vmem>>) attributes {dimension_semantics = [#tpu.dimension_semantics<parallel>, #tpu.dimension_semantics<arbitrary>], iteration_bounds = array<i64: 1, 1>, scalar_prefetch = 2 : i64, scratch_operands = 0 : i64, tpu.core_type = #tpu.core_type<tc>, window_params = [{transform_indices = @transform_0, window_bounds = array<i64: 32, 1>}, {transform_indices = @transform_1, window_bounds = array<i64: 1, 128>}, {transform_indices = @transform_2, window_bounds = array<i64: 32, 1>}, {transform_indices = @transform_3, window_bounds = array<i64: 32, 128>}, {transform_indices = @transform_4, window_bounds = array<i64: 128, 128>}, {transform_indices = @transform_5, window_bounds = array<i64: 32, 128>}]} {
    %c0_i32 = arith.constant 0 : i32
    %0 = arith.cmpi eq, %arg1, %c0_i32 : i32
    %1 = arith.extui %0 : i1 to i32
    %c0_i32_0 = arith.constant 0 : i32
    %2 = arith.cmpi ne, %1, %c0_i32_0 : i32
    scf.if %2 {
      %cst = arith.constant 0.000000e+00 : f32
      %11 = vector.broadcast %cst : f32 to vector<32x128xf32>
      %c0 = arith.constant 0 : index
      %c0_4 = arith.constant 0 : index
      %12 = vector.load %arg9[%c0, %c0_4] : memref<32x128xf32, #tpu.memory_space<vmem>>, vector<32x128xf32>
      tpu.vector_store %arg9[%c0, %c0_4], %11 {strides = array<i32>} : memref<32x128xf32, #tpu.memory_space<vmem>>, vector<32x128xf32>,
    } else {
    }
    %3 = arith.index_cast %arg0 : i32 to index
    %4 = memref.load %arg3[%3] : memref<1xi32, #tpu.memory_space<smem>>
    %5 = arith.cmpi slt, %arg1, %4 : i32
    %6 = arith.extui %5 : i1 to i32
    %c0_i32_1 = arith.constant 0 : i32
    %7 = arith.cmpi ne, %6, %c0_i32_1 : i32
    scf.if %7 {
      %c0 = arith.constant 0 : index
      %c0_4 = arith.constant 0 : index
      %11 = vector.load %arg4[%c0, %c0_4] : memref<32x1xf32, #tpu.memory_space<vmem>>, vector<32x1xf32>
      %c0_5 = arith.constant 0 : index
      %c0_6 = arith.constant 0 : index
      %12 = vector.load %arg5[%c0_5, %c0_6] : memref<1x128xf32, #tpu.memory_space<vmem>>, vector<1x128xf32>
      %13 = vector.broadcast %11 : vector<32x1xf32> to vector<32x128xf32>
      %14 = vector.broadcast %12 : vector<1x128xf32> to vector<32x128xf32>
      %15 = arith.addf %13, %14 : vector<32x128xf32>
      %16 = math.tanh %15 : vector<32x128xf32>
      %c0_7 = arith.constant 0 : index
      %c0_8 = arith.constant 0 : index
      %17 = vector.load %arg7[%c0_7, %c0_8] : memref<32x128xi8, #tpu.memory_space<vmem>>, vector<32x128xi8>
      %18 = arith.sitofp %17 : vector<32x128xi8> to vector<32x128xf32>
      %19 = arith.mulf %16, %18 : vector<32x128xf32>
      %20 = arith.truncf %19 : vector<32x128xf32> to vector<32x128xbf16>
      %c0_9 = arith.constant 0 : index
      %c0_10 = arith.constant 0 : index
      %21 = vector.load %arg9[%c0_9, %c0_10] : memref<32x128xf32, #tpu.memory_space<vmem>>, vector<32x128xf32>
      %c0_11 = arith.constant 0 : index
      %c0_12 = arith.constant 0 : index
      %22 = vector.load %arg8[%c0_11, %c0_12] : memref<128x128xbf16, #tpu.memory_space<vmem>>, vector<128x128xbf16>
      %cst = arith.constant dense<0.000000e+00> : vector<32x128xf32>
      %23 = tpu.matmul %20, %22, %cst {dimension_numbers = #tpu.dot_dimension_numbers<[1], [0], [0], [1], [0, 0, 1, 1], [], []>} : vector<32x128xbf16>, vector<128x128xbf16>, vector<32x128xf32> -> vector<32x128xf32>
      %24 = arith.addf %21, %23 : vector<32x128xf32>
      %c0_13 = arith.constant 0 : index
      %c0_14 = arith.constant 0 : index
      %25 = vector.load %arg9[%c0_13, %c0_14] : memref<32x128xf32, #tpu.memory_space<vmem>>, vector<32x128xf32>
      tpu.vector_store %arg9[%c0_13, %c0_14], %24 {strides = array<i32>} : memref<32x128xf32, #tpu.memory_space<vmem>>, vector<32x128xf32>,
    } else {
    }
    %c0_i32_2 = arith.constant 0 : i32
    %8 = arith.cmpi eq, %arg1, %c0_i32_2 : i32
    %9 = arith.extui %8 : i1 to i32
    %c0_i32_3 = arith.constant 0 : i32
    %10 = arith.cmpi ne, %9, %c0_i32_3 : i32
    scf.if %10 {
      %c0 = arith.constant 0 : index
      %c0_4 = arith.constant 0 : index
      %11 = vector.load %arg6[%c0, %c0_4] : memref<32x1xf32, #tpu.memory_space<vmem>>, vector<32x1xf32>
      %c0_5 = arith.constant 0 : index
      %c0_6 = arith.constant 0 : index
      %12 = vector.load %arg9[%c0_5, %c0_6] : memref<32x128xf32, #tpu.memory_space<vmem>>, vector<32x128xf32>
      %13 = vector.broadcast %11 : vector<32x1xf32> to vector<32x128xf32>
      %14 = arith.mulf %13, %12 : vector<32x128xf32>
      %c0_7 = arith.constant 0 : index
      %c0_8 = arith.constant 0 : index
      %15 = vector.load %arg9[%c0_7, %c0_8] : memref<32x128xf32, #tpu.memory_space<vmem>>, vector<32x128xf32>
      tpu.vector_store %arg9[%c0_7, %c0_8], %14 {strides = array<i32>} : memref<32x128xf32, #tpu.memory_space<vmem>>, vector<32x128xf32>,
    } else {
    }
    return
  }
  func.func @transform_0(%arg0: i32, %arg1: i32, %arg2: memref<1xi32, #tpu.memory_space<smem>>, %arg3: memref<1xi32, #tpu.memory_space<smem>>) -> (i32, i32) {
    %c0_i32 = arith.constant 0 : i32
    %c0_i32_0 = arith.constant 0 : i32
    return %arg0, %c0_i32 : i32, i32
  }
  func.func @transform_1(%arg0: i32, %arg1: i32, %arg2: memref<1xi32, #tpu.memory_space<smem>>, %arg3: memref<1xi32, #tpu.memory_space<smem>>) -> (i32, i32) {
    %c1_i32 = arith.constant 1 : i32
    %0 = arith.muli %arg0, %c1_i32 : i32
    %1 = arith.addi %0, %arg1 : i32
    %2 = arith.index_cast %1 : i32 to index
    %3 = memref.load %arg2[%2] : memref<1xi32, #tpu.memory_space<smem>>
    %c0_i32 = arith.constant 0 : i32
    %c0_i32_0 = arith.constant 0 : i32
    return %c0_i32, %3 : i32, i32
  }
  func.func @transform_2(%arg0: i32, %arg1: i32, %arg2: memref<1xi32, #tpu.memory_space<smem>>, %arg3: memref<1xi32, #tpu.memory_space<smem>>) -> (i32, i32) {
    %c0_i32 = arith.constant 0 : i32
    %c0_i32_0 = arith.constant 0 : i32
    return %arg0, %c0_i32 : i32, i32
  }
  func.func @transform_3(%arg0: i32, %arg1: i32, %arg2: memref<1xi32, #tpu.memory_space<smem>>, %arg3: memref<1xi32, #tpu.memory_space<smem>>) -> (i32, i32) {
    %c1_i32 = arith.constant 1 : i32
    %0 = arith.muli %arg0, %c1_i32 : i32
    %1 = arith.addi %0, %arg1 : i32
    %2 = arith.index_cast %1 : i32 to index
    %3 = memref.load %arg2[%2] : memref<1xi32, #tpu.memory_space<smem>>
    %c0_i32 = arith.constant 0 : i32
    return %arg0, %3 : i32, i32
  }
  func.func @transform_4(%arg0: i32, %arg1: i32, %arg2: memref<1xi32, #tpu.memory_space<smem>>, %arg3: memref<1xi32, #tpu.memory_space<smem>>) -> (i32, i32) {
    %c1_i32 = arith.constant 1 : i32
    %0 = arith.muli %arg0, %c1_i32 : i32
    %1 = arith.addi %0, %arg1 : i32
    %2 = arith.index_cast %1 : i32 to index
    %3 = memref.load %arg2[%2] : memref<1xi32, #tpu.memory_space<smem>>
    %c0_i32 = arith.constant 0 : i32
    %c0_i32_0 = arith.constant 0 : i32
    return %3, %c0_i32 : i32, i32
  }
  func.func @transform_5(%arg0: i32, %arg1: i32, %arg2: memref<1xi32, #tpu.memory_space<smem>>, %arg3: memref<1xi32, #tpu.memory_space<smem>>) -> (i32, i32) {
    %c0_i32 = arith.constant 0 : i32
    %c0_i32_0 = arith.constant 0 : i32
    return %arg0, %c0_i32 : i32, i32
  }
}

</mosaic_0001>

<llo_original>
// kernel: tpu_custom_call.1
$region0: #{tpu_custom_call.1}
  #allocation0 [shape = 'u32[]', space=smem, size = 0x4, offset = 0x4, fixed_abs, tag = 'smem constant byte address 0x4 - core index']
  #allocation1 [shape = 'u32[144,128]{1,0:T(1,128)}', space=vmem, size = 0x12000, scoped, tag = 'internal scratch']
  #allocation2 [shape = 's32[1]{0}', space=sflag, size = 0x4, scoped, tag = 'scoped memory for tpu_custom_call.1']
  #allocation3 [shape = 's32[1]{0:T(128)S(6)}', space=smem, size = 0x200, scoped, tag = 'prefetched SMEM operand 0']
  #allocation4 [shape = 's32[1]{0:T(128)S(6)}', space=smem, size = 0x200, scoped, tag = 'prefetched SMEM operand 1']
  %s0 = inlined_call_operand.<no memory space> [shape: s32[1], index: 0, kind: input, shape index: {}]
  %s1 = inlined_call_operand.<no memory space> [shape: s32[1], index: 1, kind: input, shape index: {}]
  %s2 = inlined_call_operand.vmem [shape: f32[32,1], index: 2, kind: input, shape index: {}]
  %s3 = inlined_call_operand.vmem [shape: f32[1,128], index: 3, kind: input, shape index: {}]
  %s4 = inlined_call_operand.vmem [shape: f32[32,1], index: 4, kind: input, shape index: {}]
  %s5 = inlined_call_operand.vmem [shape: s8[32,128], index: 5, kind: input, shape index: {}]
  %s6 = inlined_call_operand.vmem [shape: bf16[128,128], index: 6, kind: input, shape index: {}]
  %s7 = inlined_call_operand.hbm [shape: f32[32,128], index: 7, kind: output, shape index: {}]
  %s8 = sld [smem:[#allocation0]]
  $region42: #{tpu_custom_call.1} parent=0
    _
  %s10 = ssub.s32 1, %s8
  %s11 = scalar_select 0, %s10, %s8
  %12 = sst [smem:[#allocation3]] %s0
  %13 = sst [smem:[#allocation4]] %s1
  $region1: #{tpu_custom_call.1} parent=0
    #allocation5 [shape = 'u8[16384]{0}', space=vmem, size = 0x4000, scoped, tag = 'output window, operand 0, single buffered']
    #allocation6 [shape = 's32[1]{0}', space=sflag, size = 0x4, scoped, tag = 'scoped memory for tpu_custom_call.1']
    %14 = vsyncpa [#allocation6], 0
    // Predicated region
    $region2: #{tpu_custom_call.1} parent=1 // pred_check
      _
    $region3: #{tpu_custom_call.1} parent=1 // pred_check_branch
      %16 = sbr.rel (0) target = $region5
    $region4: #{tpu_custom_call.1} parent=1 // pred_region
      _
    $region5: #{tpu_custom_call.1} parent=1 // pred_fallthru
      _
    // Predicated region
    $region6: #{tpu_custom_call.1} parent=1 // pred_check
      _
    $region7: #{tpu_custom_call.1} parent=1 // pred_check_branch
      %18 = sbr.rel (0) target = $region9
    $region8: #{tpu_custom_call.1} parent=1 // pred_region
      %s19 = sadd.s32 0, 0
      %s20 = sld [smem:[#allocation3 + %s19]]
      %p21 = scmp.lt.s32.totalorder %s20, 0
      %s22 = scalar_select %p21, %s20, 0
      %s23 = scalar_lea.vmem %s3, %s22
      %s24 = sadd.s32 0, 0
      %s25 = sld [smem:[#allocation3 + %s24]]
    $region9: #{tpu_custom_call.1} parent=1 // pred_fallthru
      _
    // Predicated region
    $region10: #{tpu_custom_call.1} parent=1 // pred_check
      _
    $region11: #{tpu_custom_call.1} parent=1 // pred_check_branch
      %27 = sbr.rel (0) target = $region13
    $region12: #{tpu_custom_call.1} parent=1 // pred_region
      _
    $region13: #{tpu_custom_call.1} parent=1 // pred_fallthru
      _
    // Predicated region
    $region14: #{tpu_custom_call.1} parent=1 // pred_check
      _
    $region15: #{tpu_custom_call.1} parent=1 // pred_check_branch
      %29 = sbr.rel (0) target = $region17
    $region16: #{tpu_custom_call.1} parent=1 // pred_region
      %s30 = sadd.s32 0, 0
      %s31 = sld [smem:[#allocation3 + %s30]]
      %p32 = scmp.lt.s32.totalorder %s31, 0
      %s33 = scalar_select %p32, %s31, 0
      %s34 = smul.addr %s33, 8
      %s35 = scalar_lea.vmem %s5, %s34
      %s36 = sadd.s32 0, 0
      %s37 = sld [smem:[#allocation3 + %s36]]
    $region17: #{tpu_custom_call.1} parent=1 // pred_fallthru
      _
    // Predicated region
    $region18: #{tpu_custom_call.1} parent=1 // pred_check
      _
    $region19: #{tpu_custom_call.1} parent=1 // pred_check_branch
      %39 = sbr.rel (0) target = $region21
    $region20: #{tpu_custom_call.1} parent=1 // pred_region
      %s40 = sadd.s32 0, 0
      %s41 = sld [smem:[#allocation3 + %s40]]
      %s42 = smul.u32 16, %s41
      %p43 = scmp.lt.s32.totalorder %s42, 15
      %s44 = scalar_select %p43, %s42, 15
      %s45 = smul.addr %s44, 4
      %s46 = scalar_lea.vmem %s6, %s45
      %s47 = sadd.s32 0, 0
      %s48 = sld [smem:[#allocation3 + %s47]]
      %s49 = smul.u32 16, %s48
    $region21: #{tpu_custom_call.1} parent=1 // pred_fallthru
      _
    %s50 = sadd.s32 0, 0
    %s51 = sld [smem:[#allocation3 + %s50]]
    %p52 = scmp.lt.s32.totalorder %s51, 0
    %s53 = scalar_select %p52, %s51, 0
    %s54 = scalar_lea.vmem %s3, %s53
    %s55 = sadd.s32 0, 0
    %s56 = sld [smem:[#allocation3 + %s55]]
    %p57 = scmp.lt.s32.totalorder %s56, 0
    %s58 = scalar_select %p57, %s56, 0
    %s59 = smul.addr %s58, 8
    %s60 = scalar_lea.vmem %s5, %s59
    %s61 = sadd.s32 0, 0
    %s62 = sld [smem:[#allocation3 + %s61]]
    %s63 = smul.u32 16, %s62
    %p64 = scmp.lt.s32.totalorder %s63, 15
    %s65 = scalar_select %p64, %s63, 15
    %s66 = smul.addr %s65, 4
    %s67 = scalar_lea.vmem %s6, %s66
    %s68 = sadd.s32 0, 0
    %s69 = sld [smem:[#allocation3 + %s68]]
    %p70 = scmp.lt.s32.totalorder %s69, 0
    %s71 = scalar_select %p70, %s69, 0
    %s72 = scalar_lea.vmem %s3, %s71
    %s73 = sadd.s32 0, 0
    %s74 = sld [smem:[#allocation3 + %s73]]
    %s75 = sadd.s32 0, 0
    %s76 = sld [smem:[#allocation3 + %s75]]
    %p77 = scmp.lt.s32.totalorder %s76, 0
    %s78 = scalar_select %p77, %s76, 0
    %s79 = smul.addr %s78, 8
    %s80 = scalar_lea.vmem %s5, %s79
    %s81 = sadd.s32 0, 0
    %s82 = sld [smem:[#allocation3 + %s81]]
    %s83 = sadd.s32 0, 0
    %s84 = sld [smem:[#allocation3 + %s83]]
    %s85 = smul.u32 16, %s84
    %p86 = scmp.lt.s32.totalorder %s85, 15
    %s87 = scalar_select %p86, %s85, 15
    %s88 = smul.addr %s87, 4
    %s89 = scalar_lea.vmem %s6, %s88
    %s90 = sadd.s32 0, 0
    %s91 = sld [smem:[#allocation3 + %s90]]
    %s92 = smul.u32 16, %s91
    %p94 = scmp.eq.s32.totalorder 0, 0
    // Predicated region
    $region22: #{tpu_custom_call.1} parent=1 // pred_check
      %p95 = pneg %p94
    $region23: #{tpu_custom_call.1} parent=1 // pred_check_branch
      %97 = sbr.rel (%p95) target = $region25
    $region24: #{tpu_custom_call.1} parent=1 // pred_region
      %98 = vst [vmem:[#allocation5] sm:$0xff] 0.0
      %99 = vst [vmem:[#allocation5 + $0x8] sm:$0xff] 0.0
      %100 = vst [vmem:[#allocation5 + $0x10] sm:$0xff] 0.0
      %101 = vst [vmem:[#allocation5 + $0x18] sm:$0xff] 0.0
    $region25: #{tpu_custom_call.1} parent=1 // pred_fallthru
      _
    %s102 = sld [smem:[#allocation4]]
    %p103 = scmp.lt.s32.totalorder 0, %s102
    // Predicated region
    $region26: #{tpu_custom_call.1} parent=1 // pred_check
      %p104 = pneg %p103
    $region27: #{tpu_custom_call.1} parent=1 // pred_check_branch
      %106 = sbr.rel (%p104) target = $region29
    $region28: #{tpu_custom_call.1} parent=1 // pred_region
      %v107 = vld [vmem:[%s2] sm:$0xff]
      %v108 = vld [vmem:[%s2 + $0x8] sm:$0xff]
      %v109 = vld [vmem:[%s2 + $0x10] sm:$0xff]
      %v110 = vld [vmem:[%s2 + $0x18] sm:$0xff]
      %v111 = vld [vmem:[%s72] sm:$0x1]
      %113 = vset.pattern.permute.xlu0 0
      %114 = vperm.xlu0 %113, %v107
      %v115 = vpop.permute.xlu0 %114
      %118 = vset.pattern.permute.xlu0 0
      %119 = vperm.xlu0 %118, %v108
      %v120 = vpop.permute.xlu0 %119
      %123 = vset.pattern.permute.xlu0 0
      %124 = vperm.xlu0 %123, %v109
      %v125 = vpop.permute.xlu0 %124
      %128 = vset.pattern.permute.xlu0 0
      %129 = vperm.xlu0 %128, %v110
      %v130 = vpop.permute.xlu0 %129
      %v133 = vlaneseq
      %v134 = vshrl.u32 %v133, 7
      %v135 = vsub.s32 0, %v134
      %v136 = vrot.slane %v111, %v135
      %v138 = vadd.f32 %v115, %v136
      %v139 = vadd.f32 %v120, %v136
      %v140 = vadd.f32 %v125, %v136
      %v141 = vadd.f32 %v130, %v136
      %v142 = vtanh.pop %v138
      %v143 = vtanh.pop %v139
      %v144 = vtanh.pop %v140
      %v145 = vtanh.pop %v141
      %v146 = vld [vmem:[%s80] sm:$0xff]
      %v147 = vunpack.c.0.s8 %v146
      %v148 = vunpack.c.1.s8 %v146
      %v149 = vunpack.c.2.s8 %v146
      %v150 = vunpack.c.3.s8 %v146
      %v151 = vcvt.s32.f32 %v147
      %v152 = vcvt.s32.f32 %v148
      %v153 = vcvt.s32.f32 %v149
      %v154 = vcvt.s32.f32 %v150
      %v155 = vmul.f32 %v142, %v151
      %v156 = vmul.f32 %v143, %v152
      %v157 = vmul.f32 %v144, %v153
      %v158 = vmul.f32 %v145, %v154
      %v159 = vpack.c.bf16 %v156, %v155
      %v160 = vpack.c.bf16 %v158, %v157
      %v161 = vld [vmem:[#allocation5] sm:$0xff]
      %v162 = vld [vmem:[#allocation5 + $0x8] sm:$0xff]
      %v163 = vld [vmem:[#allocation5 + $0x10] sm:$0xff]
      %v164 = vld [vmem:[#allocation5 + $0x18] sm:$0xff]
      %v165 = vld [vmem:[%s89] sm:$0xf]
      %v166 = vld [vmem:[%s89 + $0x4] sm:$0xf]
      %v167 = vld [vmem:[%s89 + $0x8] sm:$0xf]
      %v168 = vld [vmem:[%s89 + $0xc] sm:$0xf]
      %v169 = vld [vmem:[%s89 + $0x10] sm:$0xf]
      %v170 = vld [vmem:[%s89 + $0x14] sm:$0xf]
      %v171 = vld [vmem:[%s89 + $0x18] sm:$0xf]
      %v172 = vld [vmem:[%s89 + $0x1c] sm:$0xf]
      %v173 = vld [vmem:[%s89 + $0x20] sm:$0xf]
      %v174 = vld [vmem:[%s89 + $0x24] sm:$0xf]
      %v175 = vld [vmem:[%s89 + $0x28] sm:$0xf]
      %v176 = vld [vmem:[%s89 + $0x2c] sm:$0xf]
      %v177 = vld [vmem:[%s89 + $0x30] sm:$0xf]
      %v178 = vld [vmem:[%s89 + $0x34] sm:$0xf]
      %v179 = vld [vmem:[%s89 + $0x38] sm:$0xf]
      %v180 = vld [vmem:[%s89 + $0x3c] sm:$0xf]
      %v197 = vunpack.c.l.b16 %v165
      %v198 = vunpack.c.l.b16 %v166
      %v199 = vunpack.c.l.b16 %v167
      %v200 = vunpack.c.l.b16 %v168
      %v201 = vunpack.c.l.b16 %v169
      %v202 = vunpack.c.l.b16 %v170
      %v203 = vunpack.c.l.b16 %v171
      %v204 = vunpack.c.l.b16 %v172
      %v205 = vunpack.c.l.b16 %v173
      %v206 = vunpack.c.l.b16 %v174
      %v207 = vunpack.c.l.b16 %v175
      %v208 = vunpack.c.l.b16 %v176
      %v209 = vunpack.c.l.b16 %v177
      %v210 = vunpack.c.l.b16 %v178
      %v211 = vunpack.c.l.b16 %v179
      %v212 = vunpack.c.l.b16 %v180
      %v213 = vpack.c.b16 %v198, %v197
      %v214 = vpack.c.b16 %v200, %v199
      %v215 = vpack.c.b16 %v202, %v201
      %v216 = vpack.c.b16 %v204, %v203
      %v217 = vpack.c.b16 %v206, %v205
      %v218 = vpack.c.b16 %v208, %v207
      %v219 = vpack.c.b16 %v210, %v209
      %v220 = vpack.c.b16 %v212, %v211
      %229 = vmatprep.subr.bf16.mxu0 0
      %230 = vmatpush1.bf16.msra.mxu0 %v213
      %231 = vmatprep.subr.bf16.mxu0 0
      %232 = vmatpush1.bf16.msra.mxu0 %v214
      %233 = vmatprep.subr.bf16.mxu0 0
      %234 = vmatpush1.bf16.msra.mxu0 %v215
      %235 = vmatprep.subr.bf16.mxu0 0
      %236 = vmatpush1.bf16.msra.mxu0 %v216
      %237 = vmatprep.subr.bf16.mxu0 0
      %238 = vmatpush1.bf16.msra.mxu0 %v217
      %239 = vmatprep.subr.bf16.mxu0 0
      %240 = vmatpush1.bf16.msra.mxu0 %v218
      %241 = vmatprep.subr.bf16.mxu0 0
      %242 = vmatpush1.bf16.msra.mxu0 %v219
      %243 = vmatprep.subr.bf16.mxu0 0
      %244 = vmatpush1.bf16.msra.mxu0 %v220
      %245 = vmatprep.subr.bf16.mxu0 0
      %246 = vmatpush1.bf16.msra.mxu0 0
      %247 = vmatprep.subr.bf16.mxu0 0
      %248 = vmatpush1.bf16.msra.mxu0 0
      %249 = vmatprep.subr.bf16.mxu0 0
      %250 = vmatpush1.bf16.msra.mxu0 0
      %251 = vmatprep.subr.bf16.mxu0 0
      %252 = vmatpush1.bf16.msra.mxu0 0
      %253 = vmatprep.subr.bf16.mxu0 0
      %254 = vmatpush1.bf16.msra.mxu0 0
      %255 = vmatprep.subr.bf16.mxu0 0
      %256 = vmatpush1.bf16.msra.mxu0 0
      %257 = vmatprep.subr.bf16.mxu0 0
      %258 = vmatpush1.bf16.msra.mxu0 0
      %259 = vmatprep.subr.bf16.mxu0 0
      %260 = vmatpush1.bf16.msra.mxu0 0
      %261 = vmatprep.mubr.bf16.mxu0 0
      %262 = vmatmul.mubr.bf16.gmra.mrb[0].mxu0 %v159
      %v263 = vpop.f32.mrb[0].mxu0
      %v264 = vadd.f32 0.0, %v263
      %v265 = vpop.f32.mrb[0].mxu0
      %v266 = vpop.f32.mrb[0].mxu0
      %v267 = vadd.f32 0.0, %v266
      %v268 = vpop.f32.mrb[0].mxu0
      %269 = vmatprep.mubr.bf16.mxu0 0
      %270 = vmatmul.mubr.bf16.gmra.mrb[0].mxu0 %v160
      %v271 = vpop.f32.mrb[0].mxu0
      %v272 = vadd.f32 0.0, %v271
      %v273 = vpop.f32.mrb[0].mxu0
      %v274 = vpop.f32.mrb[0].mxu0
      %v275 = vadd.f32 0.0, %v274
      %v276 = vpop.f32.mrb[0].mxu0
      %277 = vdwg.mxu0
      %v278 = vadd.f32 %v161, %v264
      %v279 = vadd.f32 %v162, %v267
      %v280 = vadd.f32 %v163, %v272
      %v281 = vadd.f32 %v164, %v275
      %282 = vst [vmem:[#allocation5] sm:$0xff] %v278
      %283 = vst [vmem:[#allocation5 + $0x8] sm:$0xff] %v279
      %284 = vst [vmem:[#allocation5 + $0x10] sm:$0xff] %v280
      %285 = vst [vmem:[#allocation5 + $0x18] sm:$0xff] %v281
    $region29: #{tpu_custom_call.1} parent=1 // pred_fallthru
      _
    // Predicated region
    $region30: #{tpu_custom_call.1} parent=1 // pred_check
      %p286 = pneg %p94
    $region31: #{tpu_custom_call.1} parent=1 // pred_check_branch
      %288 = sbr.rel (%p286) target = $region33
    $region32: #{tpu_custom_call.1} parent=1 // pred_region
      %v289 = vld [vmem:[%s4] sm:$0xff]
      %v290 = vld [vmem:[%s4 + $0x8] sm:$0xff]
      %v291 = vld [vmem:[%s4 + $0x10] sm:$0xff]
      %v292 = vld [vmem:[%s4 + $0x18] sm:$0xff]
      %v293 = vld [vmem:[#allocation5] sm:$0xff]
      %v294 = vld [vmem:[#allocation5 + $0x8] sm:$0xff]
      %v295 = vld [vmem:[#allocation5 + $0x10] sm:$0xff]
      %v296 = vld [vmem:[#allocation5 + $0x18] sm:$0xff]
      %298 = vset.pattern.permute.xlu0 0
      %299 = vperm.xlu0 %298, %v289
      %v300 = vpop.permute.xlu0 %299
      %303 = vset.pattern.permute.xlu0 0
      %304 = vperm.xlu0 %303, %v290
      %v305 = vpop.permute.xlu0 %304
      %308 = vset.pattern.permute.xlu0 0
      %309 = vperm.xlu0 %308, %v291
      %v310 = vpop.permute.xlu0 %309
      %313 = vset.pattern.permute.xlu0 0
      %314 = vperm.xlu0 %313, %v292
      %v315 = vpop.permute.xlu0 %314
      %v317 = vmul.f32 %v300, %v293
      %v318 = vmul.f32 %v305, %v294
      %v319 = vmul.f32 %v310, %v295
      %v320 = vmul.f32 %v315, %v296
      %321 = vst [vmem:[#allocation5] sm:$0xff] %v317
      %322 = vst [vmem:[#allocation5 + $0x8] sm:$0xff] %v318
      %323 = vst [vmem:[#allocation5 + $0x10] sm:$0xff] %v319
      %324 = vst [vmem:[#allocation5 + $0x18] sm:$0xff] %v320
    $region33: #{tpu_custom_call.1} parent=1 // pred_fallthru
      _
    // Predicated region
    $region34: #{tpu_custom_call.1} parent=1 // pred_check
      _
    $region35: #{tpu_custom_call.1} parent=1 // pred_check_branch
      %326 = sbr.rel (0) target = $region37
    $region36: #{tpu_custom_call.1} parent=1 // pred_region
      %s328 = ssub.s32 512, 512
      %329 = vsyncadd [#allocation6], %s328
      %s330 = sshll.u32 [#allocation5], 4
      %s331 = int_to_ptr.vmem [resolvable:$true] %s330
      %336 = dma.vmem_to_hbm [thread:$0]  %s331, 512, %s7, [#allocation6], 128, 128, 8
    $region37: #{tpu_custom_call.1} parent=1 // pred_fallthru
      _
    // Predicated region
    $region38: #{tpu_custom_call.1} parent=1 // pred_check
      _
    $region39: #{tpu_custom_call.1} parent=1 // pred_check_branch
      %338 = sbr.rel (0) target = $region41
    $region40: #{tpu_custom_call.1} parent=1 // pred_region
      %339 = dma.done [#allocation6], 512
    $region41: #{tpu_custom_call.1} parent=1 // pred_fallthru
      _
    %340 = vsyncpa [#allocation6], 1

</llo_original>
